<compile_context>
chip_gen: v5e
topology: v5e:2x2
jax: 0.10.0
libtpu: 0.0.40
codegen_flags: <defaults>
</compile_context>

<pallas_src>
import functools

import jax
import jax.numpy as jnp
from jax.experimental import pallas as pl
from jax.experimental.pallas import tpu as pltpu


# ---------------------------------------------------------------------------
# Fused Pallas kernel
# ---------------------------------------------------------------------------
def fused_gin_block_kernel(a_ref, x_ref, wp_ref, bp_ref, w1_ref, b1_ref,
                           w2_ref, b2_ref, gamma_ref, beta_ref, o_ref,
                           *, num_convs, do_conv_norm, do_residual):
    # Load everything once (hoisted out of the conv loop).  Matmul operands in
    # bf16 for MXU throughput; accumulate / BN / ReLU in f32.
    a_bf = a_ref[...].astype(jnp.bfloat16)
    wp = wp_ref[...].astype(jnp.bfloat16)
    w1 = w1_ref[...].astype(jnp.bfloat16)
    w2 = w2_ref[...].astype(jnp.bfloat16)
    bp = bp_ref[...]
    b1 = b1_ref[...]
    b2 = b2_ref[...]
    gamma = gamma_ref[...]
    beta = beta_ref[...]

    # projection: ReLU(x @ Wp + bp)   (Dropout = identity)
    x = jnp.dot(x_ref[...].astype(jnp.bfloat16), wp,
                preferred_element_type=jnp.float32) + bp
    x = jnp.maximum(x, 0.0)
    residual = x

    # num_convs is a small static int -> fully unrolled; activation stays in vregs.
    for _ in range(num_convs):
        # GIN aggregation: (A + (1+eps) I) @ x
        agg = jnp.dot(a_bf, x.astype(jnp.bfloat16),
                      preferred_element_type=jnp.float32)
        # MLP: Linear -> ReLU -> Linear
        h = jnp.dot(agg.astype(jnp.bfloat16), w1,
                    preferred_element_type=jnp.float32) + b1
        h = jnp.maximum(h, 0.0)
        h = jnp.dot(h.astype(jnp.bfloat16), w2,
                    preferred_element_type=jnp.float32) + b2
        if do_conv_norm:
            # BatchNorm1d with per-feature batch statistics over the node axis.
            # (Zero-padded lanes are exactly zero and stay zero; per-feature
            #  stats mean padding never pollutes the real columns.)
            mean = jnp.mean(h, axis=0, keepdims=True)
            diff = h - mean
            var = jnp.mean(diff * diff, axis=0, keepdims=True)
            h = diff * jax.lax.rsqrt(var + 1e-5) * gamma + beta
        x = jnp.maximum(h, 0.0)

    if do_residual:
        x = x + residual          # residual folded into the epilogue (free on VALU)
    o_ref[...] = x


# ---------------------------------------------------------------------------
# Wrapper: one pallas_call, full-array blocks (tiny shapes -> fit in VMEM),
# feature axes zero-padded to multiples of 128 lanes.
# ---------------------------------------------------------------------------
def _round_up(v, m):
    return (v + m - 1) // m * m


def _pad2d(a, rows, cols):
    r, c = a.shape
    return jnp.pad(a, ((0, rows - r), (0, cols - c)))


def _full_spec(shape):
    return pl.BlockSpec(shape, lambda i: tuple(0 for _ in shape))


def gin_conv_block(x, edge_index, params, num_convs, do_conv_norm=True,
                   do_residual=True, eps=0.0):
    """Full GINConvBlock forward. x: [N, in_dim] f32, edge_index: [2, E] int32."""
    N, in_dim = x.shape
    H = params["wp"].shape[1]
    in_p = _round_up(in_dim, 128)
    Hp = _round_up(H, 128)

    # Dense A_hat = A + (1+eps) I  (scatter glue done once in JAX, outside the kernel)
    src, dst = edge_index[0], edge_index[1]
    a = jnp.zeros((N, N), jnp.float32).at[dst, src].add(1.0)
    a_hat = a + (1.0 + eps) * jnp.eye(N, dtype=jnp.float32)

    # Zero-pad feature / parameter lanes to multiples of 128 (lane-dense stores).
    x_p = _pad2d(x, N, in_p)
    wp = _pad2d(params["wp"], in_p, Hp)
    bp = _pad2d(params["bp"], 1, Hp)
    w1 = _pad2d(params["w1"], Hp, Hp)
    b1 = _pad2d(params["b1"], 1, Hp)
    w2 = _pad2d(params["w2"], Hp, Hp)
    b2 = _pad2d(params["b2"], 1, Hp)
    gamma = _pad2d(params["gamma"], 1, Hp)   # padded lanes: gamma = 0
    beta = _pad2d(params["beta"], 1, Hp)     # padded lanes: beta  = 0

    kernel = functools.partial(
        fused_gin_block_kernel,
        num_convs=int(num_convs),
        do_conv_norm=bool(do_conv_norm),
        do_residual=bool(do_residual),
    )

    out_p = pl.pallas_call(
        kernel,
        out_shape=jax.ShapeDtypeStruct((N, Hp), jnp.float32),
        grid=(1,),
        in_specs=[_full_spec(a_hat.shape), _full_spec(x_p.shape),
                  _full_spec(wp.shape), _full_spec(bp.shape),
                  _full_spec(w1.shape), _full_spec(b1.shape),
                  _full_spec(w2.shape), _full_spec(b2.shape),
                  _full_spec(gamma.shape), _full_spec(beta.shape)],
        out_specs=_full_spec((N, Hp)),
        compiler_params=pltpu.CompilerParams(
            dimension_semantics=("arbitrary",)),
    )(a_hat, x_p, wp, bp, w1, b1, w2, b2, gamma, beta)

    return out_p[:, :H]


# ---------------------------------------------------------------------------
# Deterministic parameter init (PyTorch-style uniform(-1/sqrt(fan_in), +))
# ---------------------------------------------------------------------------
def init_params(key, in_dim, hidden_dim):
    ks = jax.random.split(key, 6)

    def lin(kw, kb, fan_in, fan_out):
        bound = 1.0 / jnp.sqrt(float(fan_in))
        w = jax.random.uniform(kw, (fan_in, fan_out), jnp.float32, -bound, bound)
        b = jax.random.uniform(kb, (1, fan_out), jnp.float32, -bound, bound)
        return w, b

    wp, bp = lin(ks[0], ks[1], in_dim, hidden_dim)       # projection Linear
    w1, b1 = lin(ks[2], ks[3], hidden_dim, hidden_dim)   # GIN MLP layer 1
    w2, b2 = lin(ks[4], ks[5], hidden_dim, hidden_dim)   # GIN MLP layer 2
    gamma = jnp.ones((1, hidden_dim), jnp.float32)       # BatchNorm1d weight
    beta = jnp.zeros((1, hidden_dim), jnp.float32)       # BatchNorm1d bias
    return {"wp": wp, "bp": bp, "w1": w1, "b1": b1, "w2": w2, "b2": b2,
            "gamma": gamma, "beta": beta}


# ---------------------------------------------------------------------------
if __name__ == "__main__":
    key = jax.random.PRNGKey(0)
    k_x, k_e1, k_e2, k_p = jax.random.split(key, 4)

    # Small graph: 16 nodes, 8 input features, hidden_dim=32, 48 edges, 2 convs
    N, IN_DIM, HIDDEN, E, NUM_CONVS = 16, 8, 32, 48, 2

    x = jax.random.normal(k_x, (N, IN_DIM), jnp.float32)
    src = jax.random.randint(k_e1, (E,), 0, N)
    dst = jax.random.randint(k_e2, (E,), 0, N)
    edge_index = jnp.stack([src, dst], axis=0)            # [2, E]

    params = init_params(k_p, IN_DIM, HIDDEN)

    out = gin_conv_block(x, edge_index, params, num_convs=NUM_CONVS,
                         do_conv_norm=True, do_residual=True)
    out = jax.block_until_ready(out)
    assert out.shape == (N, HIDDEN) and out.dtype == jnp.float32
    assert bool(jnp.all(jnp.isfinite(out)))
    print("KERNEL_OK")
</pallas_src>

<mosaic_0001>
module attributes {stable_mosaic.version = 11 : i64} {
  func.func @fused_gin_block_kernel(%arg0: i32, %arg1: memref<16x16xf32, #tpu.memory_space<vmem>>, %arg2: memref<16x128xf32, #tpu.memory_space<vmem>>, %arg3: memref<128x128xf32, #tpu.memory_space<vmem>>, %arg4: memref<1x128xf32, #tpu.memory_space<vmem>>, %arg5: memref<128x128xf32, #tpu.memory_space<vmem>>, %arg6: memref<1x128xf32, #tpu.memory_space<vmem>>, %arg7: memref<128x128xf32, #tpu.memory_space<vmem>>, %arg8: memref<1x128xf32, #tpu.memory_space<vmem>>, %arg9: memref<1x128xf32, #tpu.memory_space<vmem>>, %arg10: memref<1x128xf32, #tpu.memory_space<vmem>>, %arg11: memref<16x128xf32, #tpu.memory_space<vmem>>) attributes {dimension_semantics = [#tpu.dimension_semantics<arbitrary>], iteration_bounds = array<i64: 1>, scalar_prefetch = 0 : i64, scratch_operands = 0 : i64, tpu.core_type = #tpu.core_type<tc>, window_params = [{pipeline_mode = #tpu.pipeline_mode<synchronous>, transform_indices = @transform_0, window_bounds = array<i64: 16, 16>}, {pipeline_mode = #tpu.pipeline_mode<synchronous>, transform_indices = @transform_1, window_bounds = array<i64: 16, 128>}, {pipeline_mode = #tpu.pipeline_mode<synchronous>, transform_indices = @transform_2, window_bounds = array<i64: 128, 128>}, {pipeline_mode = #tpu.pipeline_mode<synchronous>, transform_indices = @transform_3, window_bounds = array<i64: 1, 128>}, {pipeline_mode = #tpu.pipeline_mode<synchronous>, transform_indices = @transform_4, window_bounds = array<i64: 128, 128>}, {pipeline_mode = #tpu.pipeline_mode<synchronous>, transform_indices = @transform_5, window_bounds = array<i64: 1, 128>}, {pipeline_mode = #tpu.pipeline_mode<synchronous>, transform_indices = @transform_6, window_bounds = array<i64: 128, 128>}, {pipeline_mode = #tpu.pipeline_mode<synchronous>, transform_indices = @transform_7, window_bounds = array<i64: 1, 128>}, {pipeline_mode = #tpu.pipeline_mode<synchronous>, transform_indices = @transform_8, window_bounds = array<i64: 1, 128>}, {pipeline_mode = #tpu.pipeline_mode<synchronous>, transform_indices = @transform_9, window_bounds = array<i64: 1, 128>}, {pipeline_mode = #tpu.pipeline_mode<synchronous>, transform_indices = @transform_10, window_bounds = array<i64: 16, 128>}]} {
    %c0 = arith.constant 0 : index
    %c0_0 = arith.constant 0 : index
    %0 = vector.load %arg1[%c0, %c0_0] : memref<16x16xf32, #tpu.memory_space<vmem>>, vector<16x16xf32>
    %1 = arith.truncf %0 : vector<16x16xf32> to vector<16x16xbf16>
    %c0_1 = arith.constant 0 : index
    %c0_2 = arith.constant 0 : index
    %2 = vector.load %arg3[%c0_1, %c0_2] : memref<128x128xf32, #tpu.memory_space<vmem>>, vector<128x128xf32>
    %3 = arith.truncf %2 : vector<128x128xf32> to vector<128x128xbf16>
    %c0_3 = arith.constant 0 : index
    %c0_4 = arith.constant 0 : index
    %4 = vector.load %arg5[%c0_3, %c0_4] : memref<128x128xf32, #tpu.memory_space<vmem>>, vector<128x128xf32>
    %5 = arith.truncf %4 : vector<128x128xf32> to vector<128x128xbf16>
    %c0_5 = arith.constant 0 : index
    %c0_6 = arith.constant 0 : index
    %6 = vector.load %arg7[%c0_5, %c0_6] : memref<128x128xf32, #tpu.memory_space<vmem>>, vector<128x128xf32>
    %7 = arith.truncf %6 : vector<128x128xf32> to vector<128x128xbf16>
    %c0_7 = arith.constant 0 : index
    %c0_8 = arith.constant 0 : index
    %8 = vector.load %arg4[%c0_7, %c0_8] : memref<1x128xf32, #tpu.memory_space<vmem>>, vector<1x128xf32>
    %c0_9 = arith.constant 0 : index
    %c0_10 = arith.constant 0 : index
    %9 = vector.load %arg6[%c0_9, %c0_10] : memref<1x128xf32, #tpu.memory_space<vmem>>, vector<1x128xf32>
    %c0_11 = arith.constant 0 : index
    %c0_12 = arith.constant 0 : index
    %10 = vector.load %arg8[%c0_11, %c0_12] : memref<1x128xf32, #tpu.memory_space<vmem>>, vector<1x128xf32>
    %c0_13 = arith.constant 0 : index
    %c0_14 = arith.constant 0 : index
    %11 = vector.load %arg9[%c0_13, %c0_14] : memref<1x128xf32, #tpu.memory_space<vmem>>, vector<1x128xf32>
    %c0_15 = arith.constant 0 : index
    %c0_16 = arith.constant 0 : index
    %12 = vector.load %arg10[%c0_15, %c0_16] : memref<1x128xf32, #tpu.memory_space<vmem>>, vector<1x128xf32>
    %c0_17 = arith.constant 0 : index
    %c0_18 = arith.constant 0 : index
    %13 = vector.load %arg2[%c0_17, %c0_18] : memref<16x128xf32, #tpu.memory_space<vmem>>, vector<16x128xf32>
    %14 = arith.truncf %13 : vector<16x128xf32> to vector<16x128xbf16>
    %cst = arith.constant dense<0.000000e+00> : vector<16x128xf32>
    %15 = tpu.matmul %14, %3, %cst {dimension_numbers = #tpu.dot_dimension_numbers<[1], [0], [0], [1], [0, 0, 1, 1], [], []>} : vector<16x128xbf16>, vector<128x128xbf16>, vector<16x128xf32> -> vector<16x128xf32>
    %16 = vector.broadcast %8 : vector<1x128xf32> to vector<16x128xf32>
    %17 = arith.addf %15, %16 : vector<16x128xf32>
    %cst_19 = arith.constant 0.000000e+00 : f32
    %18 = vector.broadcast %cst_19 : f32 to vector<16x128xf32>
    %19 = arith.maximumf %17, %18 : vector<16x128xf32>
    %20 = arith.truncf %19 : vector<16x128xf32> to vector<16x128xbf16>
    %cst_20 = arith.constant dense<0.000000e+00> : vector<16x128xf32>
    %21 = tpu.matmul %1, %20, %cst_20 {dimension_numbers = #tpu.dot_dimension_numbers<[1], [0], [0], [1], [0, 0, 1, 1], [], []>} : vector<16x16xbf16>, vector<16x128xbf16>, vector<16x128xf32> -> vector<16x128xf32>
    %22 = arith.truncf %21 : vector<16x128xf32> to vector<16x128xbf16>
    %cst_21 = arith.constant dense<0.000000e+00> : vector<16x128xf32>
    %23 = tpu.matmul %22, %5, %cst_21 {dimension_numbers = #tpu.dot_dimension_numbers<[1], [0], [0], [1], [0, 0, 1, 1], [], []>} : vector<16x128xbf16>, vector<128x128xbf16>, vector<16x128xf32> -> vector<16x128xf32>
    %24 = vector.broadcast %9 : vector<1x128xf32> to vector<16x128xf32>
    %25 = arith.addf %23, %24 : vector<16x128xf32>
    %cst_22 = arith.constant 0.000000e+00 : f32
    %26 = vector.broadcast %cst_22 : f32 to vector<16x128xf32>
    %27 = arith.maximumf %25, %26 : vector<16x128xf32>
    %28 = arith.truncf %27 : vector<16x128xf32> to vector<16x128xbf16>
    %cst_23 = arith.constant dense<0.000000e+00> : vector<16x128xf32>
    %29 = tpu.matmul %28, %7, %cst_23 {dimension_numbers = #tpu.dot_dimension_numbers<[1], [0], [0], [1], [0, 0, 1, 1], [], []>} : vector<16x128xbf16>, vector<128x128xbf16>, vector<16x128xf32> -> vector<16x128xf32>
    %30 = vector.broadcast %10 : vector<1x128xf32> to vector<16x128xf32>
    %31 = arith.addf %29, %30 : vector<16x128xf32>
    %cst_24 = arith.constant dense<0.000000e+00> : vector<128xf32>
    %32 = vector.multi_reduction <add>, %31, %cst_24 [0] : vector<16x128xf32> to vector<128xf32>
    %33 = vector.shape_cast %32 : vector<128xf32> to vector<1x128xf32>
    %cst_25 = arith.constant 1.600000e+01 : f32
    %34 = vector.broadcast %cst_25 : f32 to vector<1x128xf32>
    %35 = arith.divf %33, %34 : vector<1x128xf32>
    %36 = vector.broadcast %35 : vector<1x128xf32> to vector<16x128xf32>
    %37 = arith.subf %31, %36 : vector<16x128xf32>
    %38 = arith.mulf %37, %37 : vector<16x128xf32>
    %cst_26 = arith.constant dense<0.000000e+00> : vector<128xf32>
    %39 = vector.multi_reduction <add>, %38, %cst_26 [0] : vector<16x128xf32> to vector<128xf32>
    %40 = vector.shape_cast %39 : vector<128xf32> to vector<1x128xf32>
    %cst_27 = arith.constant 1.600000e+01 : f32
    %41 = vector.broadcast %cst_27 : f32 to vector<1x128xf32>
    %42 = arith.divf %40, %41 : vector<1x128xf32>
    %cst_28 = arith.constant 9.99999974E-6 : f32
    %43 = vector.broadcast %cst_28 : f32 to vector<1x128xf32>
    %44 = arith.addf %42, %43 : vector<1x128xf32>
    %45 = math.rsqrt %44 : vector<1x128xf32>
    %46 = vector.broadcast %45 : vector<1x128xf32> to vector<16x128xf32>
    %47 = arith.mulf %37, %46 : vector<16x128xf32>
    %48 = vector.broadcast %11 : vector<1x128xf32> to vector<16x128xf32>
    %49 = arith.mulf %47, %48 : vector<16x128xf32>
    %50 = vector.broadcast %12 : vector<1x128xf32> to vector<16x128xf32>
    %51 = arith.addf %49, %50 : vector<16x128xf32>
    %cst_29 = arith.constant 0.000000e+00 : f32
    %52 = vector.broadcast %cst_29 : f32 to vector<16x128xf32>
    %53 = arith.maximumf %51, %52 : vector<16x128xf32>
    %54 = arith.truncf %53 : vector<16x128xf32> to vector<16x128xbf16>
    %cst_30 = arith.constant dense<0.000000e+00> : vector<16x128xf32>
    %55 = tpu.matmul %1, %54, %cst_30 {dimension_numbers = #tpu.dot_dimension_numbers<[1], [0], [0], [1], [0, 0, 1, 1], [], []>} : vector<16x16xbf16>, vector<16x128xbf16>, vector<16x128xf32> -> vector<16x128xf32>
    %56 = arith.truncf %55 : vector<16x128xf32> to vector<16x128xbf16>
    %cst_31 = arith.constant dense<0.000000e+00> : vector<16x128xf32>
    %57 = tpu.matmul %56, %5, %cst_31 {dimension_numbers = #tpu.dot_dimension_numbers<[1], [0], [0], [1], [0, 0, 1, 1], [], []>} : vector<16x128xbf16>, vector<128x128xbf16>, vector<16x128xf32> -> vector<16x128xf32>
    %58 = vector.broadcast %9 : vector<1x128xf32> to vector<16x128xf32>
    %59 = arith.addf %57, %58 : vector<16x128xf32>
    %cst_32 = arith.constant 0.000000e+00 : f32
    %60 = vector.broadcast %cst_32 : f32 to vector<16x128xf32>
    %61 = arith.maximumf %59, %60 : vector<16x128xf32>
    %62 = arith.truncf %61 : vector<16x128xf32> to vector<16x128xbf16>
    %cst_33 = arith.constant dense<0.000000e+00> : vector<16x128xf32>
    %63 = tpu.matmul %62, %7, %cst_33 {dimension_numbers = #tpu.dot_dimension_numbers<[1], [0], [0], [1], [0, 0, 1, 1], [], []>} : vector<16x128xbf16>, vector<128x128xbf16>, vector<16x128xf32> -> vector<16x128xf32>
    %64 = vector.broadcast %10 : vector<1x128xf32> to vector<16x128xf32>
    %65 = arith.addf %63, %64 : vector<16x128xf32>
    %cst_34 = arith.constant dense<0.000000e+00> : vector<128xf32>
    %66 = vector.multi_reduction <add>, %65, %cst_34 [0] : vector<16x128xf32> to vector<128xf32>
    %67 = vector.shape_cast %66 : vector<128xf32> to vector<1x128xf32>
    %cst_35 = arith.constant 1.600000e+01 : f32
    %68 = vector.broadcast %cst_35 : f32 to vector<1x128xf32>
    %69 = arith.divf %67, %68 : vector<1x128xf32>
    %70 = vector.broadcast %69 : vector<1x128xf32> to vector<16x128xf32>
    %71 = arith.subf %65, %70 : vector<16x128xf32>
    %72 = arith.mulf %71, %71 : vector<16x128xf32>
    %cst_36 = arith.constant dense<0.000000e+00> : vector<128xf32>
    %73 = vector.multi_reduction <add>, %72, %cst_36 [0] : vector<16x128xf32> to vector<128xf32>
    %74 = vector.shape_cast %73 : vector<128xf32> to vector<1x128xf32>
    %cst_37 = arith.constant 1.600000e+01 : f32
    %75 = vector.broadcast %cst_37 : f32 to vector<1x128xf32>
    %76 = arith.divf %74, %75 : vector<1x128xf32>
    %cst_38 = arith.constant 9.99999974E-6 : f32
    %77 = vector.broadcast %cst_38 : f32 to vector<1x128xf32>
    %78 = arith.addf %76, %77 : vector<1x128xf32>
    %79 = math.rsqrt %78 : vector<1x128xf32>
    %80 = vector.broadcast %79 : vector<1x128xf32> to vector<16x128xf32>
    %81 = arith.mulf %71, %80 : vector<16x128xf32>
    %82 = vector.broadcast %11 : vector<1x128xf32> to vector<16x128xf32>
    %83 = arith.mulf %81, %82 : vector<16x128xf32>
    %84 = vector.broadcast %12 : vector<1x128xf32> to vector<16x128xf32>
    %85 = arith.addf %83, %84 : vector<16x128xf32>
    %cst_39 = arith.constant 0.000000e+00 : f32
    %86 = vector.broadcast %cst_39 : f32 to vector<16x128xf32>
    %87 = arith.maximumf %85, %86 : vector<16x128xf32>
    %88 = arith.addf %87, %19 : vector<16x128xf32>
    %c0_40 = arith.constant 0 : index
    %c0_41 = arith.constant 0 : index
    %89 = vector.load %arg11[%c0_40, %c0_41] : memref<16x128xf32, #tpu.memory_space<vmem>>, vector<16x128xf32>
    tpu.vector_store %arg11[%c0_40, %c0_41], %88 {strides = array<i32>} : memref<16x128xf32, #tpu.memory_space<vmem>>, vector<16x128xf32>,
    return
  }
  func.func @transform_0(%arg0: i32) -> (i32, i32) {
    %c0_i32 = arith.constant 0 : i32
    %c0_i32_0 = arith.constant 0 : i32
    %c0_i32_1 = arith.constant 0 : i32
    return %c0_i32, %c0_i32_0 : i32, i32
  }
  func.func @transform_1(%arg0: i32) -> (i32, i32) {
    %c0_i32 = arith.constant 0 : i32
    %c0_i32_0 = arith.constant 0 : i32
    %c0_i32_1 = arith.constant 0 : i32
    return %c0_i32, %c0_i32_0 : i32, i32
  }
  func.func @transform_2(%arg0: i32) -> (i32, i32) {
    %c0_i32 = arith.constant 0 : i32
    %c0_i32_0 = arith.constant 0 : i32
    %c0_i32_1 = arith.constant 0 : i32
    return %c0_i32, %c0_i32_0 : i32, i32
  }
  func.func @transform_3(%arg0: i32) -> (i32, i32) {
    %c0_i32 = arith.constant 0 : i32
    %c0_i32_0 = arith.constant 0 : i32
    %c0_i32_1 = arith.constant 0 : i32
    return %c0_i32, %c0_i32_0 : i32, i32
  }
  func.func @transform_4(%arg0: i32) -> (i32, i32) {
    %c0_i32 = arith.constant 0 : i32
    %c0_i32_0 = arith.constant 0 : i32
    %c0_i32_1 = arith.constant 0 : i32
    return %c0_i32, %c0_i32_0 : i32, i32
  }
  func.func @transform_5(%arg0: i32) -> (i32, i32) {
    %c0_i32 = arith.constant 0 : i32
    %c0_i32_0 = arith.constant 0 : i32
    %c0_i32_1 = arith.constant 0 : i32
    return %c0_i32, %c0_i32_0 : i32, i32
  }
  func.func @transform_6(%arg0: i32) -> (i32, i32) {
    %c0_i32 = arith.constant 0 : i32
    %c0_i32_0 = arith.constant 0 : i32
    %c0_i32_1 = arith.constant 0 : i32
    return %c0_i32, %c0_i32_0 : i32, i32
  }
  func.func @transform_7(%arg0: i32) -> (i32, i32) {
    %c0_i32 = arith.constant 0 : i32
    %c0_i32_0 = arith.constant 0 : i32
    %c0_i32_1 = arith.constant 0 : i32
    return %c0_i32, %c0_i32_0 : i32, i32
  }
  func.func @transform_8(%arg0: i32) -> (i32, i32) {
    %c0_i32 = arith.constant 0 : i32
    %c0_i32_0 = arith.constant 0 : i32
    %c0_i32_1 = arith.constant 0 : i32
    return %c0_i32, %c0_i32_0 : i32, i32
  }
  func.func @transform_9(%arg0: i32) -> (i32, i32) {
    %c0_i32 = arith.constant 0 : i32
    %c0_i32_0 = arith.constant 0 : i32
    %c0_i32_1 = arith.constant 0 : i32
    return %c0_i32, %c0_i32_0 : i32, i32
  }
  func.func @transform_10(%arg0: i32) -> (i32, i32) {
    %c0_i32 = arith.constant 0 : i32
    %c0_i32_0 = arith.constant 0 : i32
    %c0_i32_1 = arith.constant 0 : i32
    return %c0_i32, %c0_i32_0 : i32, i32
  }
}

</mosaic_0001>

<llo_original>
// kernel: tpu_custom_call.1
$region0: #{tpu_custom_call.1}
  #allocation0 [shape = 'u32[]', space=smem, size = 0x4, offset = 0x4, fixed_abs, tag = 'smem constant byte address 0x4 - core index']
  #allocation1 [shape = 'u32[72,128]{1,0:T(1,128)}', space=vmem, size = 0x9000, scoped, tag = 'internal scratch']
  %s0 = inlined_call_operand.hbm [shape: f32[16,16], index: 0, kind: input, shape index: {}]
  %s1 = inlined_call_operand.hbm [shape: f32[16,128], index: 1, kind: input, shape index: {}]
  %s2 = inlined_call_operand.hbm [shape: f32[128,128], index: 2, kind: input, shape index: {}]
  %s3 = inlined_call_operand.vmem [shape: f32[1,128], index: 3, kind: input, shape index: {}]
  %s4 = inlined_call_operand.hbm [shape: f32[128,128], index: 4, kind: input, shape index: {}]
  %s5 = inlined_call_operand.vmem [shape: f32[1,128], index: 5, kind: input, shape index: {}]
  %s6 = inlined_call_operand.hbm [shape: f32[128,128], index: 6, kind: input, shape index: {}]
  %s7 = inlined_call_operand.vmem [shape: f32[1,128], index: 7, kind: input, shape index: {}]
  %s8 = inlined_call_operand.vmem [shape: f32[1,128], index: 8, kind: input, shape index: {}]
  %s9 = inlined_call_operand.vmem [shape: f32[1,128], index: 9, kind: input, shape index: {}]
  %s10 = inlined_call_operand.hbm [shape: f32[16,128], index: 10, kind: output, shape index: {}]
  %s11 = sld [smem:[#allocation0]]
  $region70: #{tpu_custom_call.1} parent=0
    _
  %s13 = ssub.s32 1, %s11
  %s14 = scalar_select 0, %s13, %s11
  $region1: #{tpu_custom_call.1} parent=0
    #allocation2 [shape = 'u8[8192]{0}', space=vmem, size = 0x2000, scoped, tag = 'input window, operand 0, single buffered']
    #allocation3 [shape = 's32[1]{0}', space=sflag, size = 0x4, scoped, tag = 'scoped memory for tpu_custom_call.1']
    #allocation4 [shape = 's32[1]{0}', space=sflag, size = 0x4, scoped, tag = 'scoped memory for tpu_custom_call.1']
    #allocation5 [shape = 'u8[8192]{0}', space=vmem, size = 0x2000, scoped, tag = 'input window, operand 1, single buffered']
    #allocation6 [shape = 's32[1]{0}', space=sflag, size = 0x4, scoped, tag = 'scoped memory for tpu_custom_call.1']
    #allocation7 [shape = 'u8[65536]{0}', space=vmem, size = 0x10000, scoped, tag = 'input window, operand 2, single buffered']
    #allocation8 [shape = 'u8[65536]{0}', space=vmem, size = 0x10000, scoped, tag = 'input window, operand 4, single buffered']
    #allocation9 [shape = 's32[1]{0}', space=sflag, size = 0x4, scoped, tag = 'scoped memory for tpu_custom_call.1']
    #allocation10 [shape = 'u8[65536]{0}', space=vmem, size = 0x10000, scoped, tag = 'input window, operand 6, single buffered']
    #allocation11 [shape = 'u8[8192]{0}', space=vmem, size = 0x2000, scoped, tag = 'output window, operand 0, single buffered']
    %15 = vsyncpa [#allocation3], 0
    %16 = vsyncpa [#allocation6], 0
    %17 = vsyncpa [#allocation9], 0
    %18 = vsyncpa [#allocation4], 0
    // Predicated region
    $region2: #{tpu_custom_call.1} parent=1 // pred_check
      _
    $region3: #{tpu_custom_call.1} parent=1 // pred_check_branch
      %20 = sbr.rel (0) target = $region5
    $region4: #{tpu_custom_call.1} parent=1 // pred_region
      %22 = vsyncadd [#allocation3], 0
      %s23 = sshll.u32 %s0, 4
      %s24 = int_to_ptr.hbm [resolvable:$true] %s23
      %s25 = sshll.u32 [#allocation2], 4
      %s26 = int_to_ptr.vmem [resolvable:$true] %s25
      %31 = dma.hbm_to_vmem [thread:$0]  %s24, 256, %s26, [#allocation3], 128, 128, 8
    $region5: #{tpu_custom_call.1} parent=1 // pred_fallthru
      _
    // Predicated region
    $region6: #{tpu_custom_call.1} parent=1 // pred_check
      _
    $region7: #{tpu_custom_call.1} parent=1 // pred_check_branch
      %33 = sbr.rel (0) target = $region9
    $region8: #{tpu_custom_call.1} parent=1 // pred_region
      %35 = vsyncadd [#allocation6], 0
      %s36 = sshll.u32 %s1, 4
      %s37 = int_to_ptr.hbm [resolvable:$true] %s36
      %s38 = sshll.u32 [#allocation5], 4
      %s39 = int_to_ptr.vmem [resolvable:$true] %s38
      %44 = dma.hbm_to_vmem [thread:$0]  %s37, 256, %s39, [#allocation6], 128, 128, 8
    $region9: #{tpu_custom_call.1} parent=1 // pred_fallthru
      _
    // Predicated region
    $region10: #{tpu_custom_call.1} parent=1 // pred_check
      _
    $region11: #{tpu_custom_call.1} parent=1 // pred_check_branch
      %46 = sbr.rel (0) target = $region13
    $region12: #{tpu_custom_call.1} parent=1 // pred_region
      %48 = vsyncadd [#allocation6], 0
      %s49 = sshll.u32 %s2, 4
      %s50 = int_to_ptr.hbm [resolvable:$true] %s49
      %s51 = sshll.u32 [#allocation7], 4
      %s52 = int_to_ptr.vmem [resolvable:$true] %s51
      %57 = dma.hbm_to_vmem [thread:$0]  %s50, 2048, %s52, [#allocation6], 128, 128, 8
    $region13: #{tpu_custom_call.1} parent=1 // pred_fallthru
      _
    // Predicated region
    $region14: #{tpu_custom_call.1} parent=1 // pred_check
      _
    $region15: #{tpu_custom_call.1} parent=1 // pred_check_branch
      %59 = sbr.rel (0) target = $region17
    $region16: #{tpu_custom_call.1} parent=1 // pred_region
      _
    $region17: #{tpu_custom_call.1} parent=1 // pred_fallthru
      _
    // Predicated region
    $region18: #{tpu_custom_call.1} parent=1 // pred_check
      _
    $region19: #{tpu_custom_call.1} parent=1 // pred_check_branch
      %61 = sbr.rel (0) target = $region21
    $region20: #{tpu_custom_call.1} parent=1 // pred_region
      %63 = vsyncadd [#allocation9], 0
      %s64 = sshll.u32 %s4, 4
      %s65 = int_to_ptr.hbm [resolvable:$true] %s64
      %s66 = sshll.u32 [#allocation8], 4
      %s67 = int_to_ptr.vmem [resolvable:$true] %s66
      %72 = dma.hbm_to_vmem [thread:$0]  %s65, 2048, %s67, [#allocation9], 128, 128, 8
    $region21: #{tpu_custom_call.1} parent=1 // pred_fallthru
      _
    // Predicated region
    $region22: #{tpu_custom_call.1} parent=1 // pred_check
      _
    $region23: #{tpu_custom_call.1} parent=1 // pred_check_branch
      %74 = sbr.rel (0) target = $region25
    $region24: #{tpu_custom_call.1} parent=1 // pred_region
      _
    $region25: #{tpu_custom_call.1} parent=1 // pred_fallthru
      _
    // Predicated region
    $region26: #{tpu_custom_call.1} parent=1 // pred_check
      _
    $region27: #{tpu_custom_call.1} parent=1 // pred_check_branch
      %76 = sbr.rel (0) target = $region29
    $region28: #{tpu_custom_call.1} parent=1 // pred_region
      %78 = vsyncadd [#allocation9], 0
      %s79 = sshll.u32 %s6, 4
      %s80 = int_to_ptr.hbm [resolvable:$true] %s79
      %s81 = sshll.u32 [#allocation10], 4
      %s82 = int_to_ptr.vmem [resolvable:$true] %s81
      %87 = dma.hbm_to_vmem [thread:$0]  %s80, 2048, %s82, [#allocation9], 128, 128, 8
    $region29: #{tpu_custom_call.1} parent=1 // pred_fallthru
      _
    // Predicated region
    $region30: #{tpu_custom_call.1} parent=1 // pred_check
      _
    $region31: #{tpu_custom_call.1} parent=1 // pred_check_branch
      %89 = sbr.rel (0) target = $region33
    $region32: #{tpu_custom_call.1} parent=1 // pred_region
      _
    $region33: #{tpu_custom_call.1} parent=1 // pred_fallthru
      _
    // Predicated region
    $region34: #{tpu_custom_call.1} parent=1 // pred_check
      _
    $region35: #{tpu_custom_call.1} parent=1 // pred_check_branch
      %91 = sbr.rel (0) target = $region37
    $region36: #{tpu_custom_call.1} parent=1 // pred_region
      _
    $region37: #{tpu_custom_call.1} parent=1 // pred_fallthru
      _
    // Predicated region
    $region38: #{tpu_custom_call.1} parent=1 // pred_check
      _
    $region39: #{tpu_custom_call.1} parent=1 // pred_check_branch
      %93 = sbr.rel (0) target = $region41
    $region40: #{tpu_custom_call.1} parent=1 // pred_region
      _
    $region41: #{tpu_custom_call.1} parent=1 // pred_fallthru
      _
    // Predicated region
    $region42: #{tpu_custom_call.1} parent=1 // pred_check
      _
    $region43: #{tpu_custom_call.1} parent=1 // pred_check_branch
      %95 = sbr.rel (0) target = $region45
    $region44: #{tpu_custom_call.1} parent=1 // pred_region
      %97 = dma.done [#allocation3], 256
    $region45: #{tpu_custom_call.1} parent=1 // pred_fallthru
      _
    // Predicated region
    $region46: #{tpu_custom_call.1} parent=1 // pred_check
      _
    $region47: #{tpu_custom_call.1} parent=1 // pred_check_branch
      %99 = sbr.rel (0) target = $region49
    $region48: #{tpu_custom_call.1} parent=1 // pred_region
      %101 = dma.done [#allocation6], 256
    $region49: #{tpu_custom_call.1} parent=1 // pred_fallthru
      _
    // Predicated region
    $region50: #{tpu_custom_call.1} parent=1 // pred_check
      _
    $region51: #{tpu_custom_call.1} parent=1 // pred_check_branch
      %103 = sbr.rel (0) target = $region53
    $region52: #{tpu_custom_call.1} parent=1 // pred_region
      %105 = dma.done [#allocation6], 2048
    $region53: #{tpu_custom_call.1} parent=1 // pred_fallthru
      _
    // Predicated region
    $region54: #{tpu_custom_call.1} parent=1 // pred_check
      _
    $region55: #{tpu_custom_call.1} parent=1 // pred_check_branch
      %107 = sbr.rel (0) target = $region57
    $region56: #{tpu_custom_call.1} parent=1 // pred_region
      %109 = dma.done [#allocation9], 2048
    $region57: #{tpu_custom_call.1} parent=1 // pred_fallthru
      _
    // Predicated region
    $region58: #{tpu_custom_call.1} parent=1 // pred_check
      _
    $region59: #{tpu_custom_call.1} parent=1 // pred_check_branch
      %111 = sbr.rel (0) target = $region61
    $region60: #{tpu_custom_call.1} parent=1 // pred_region
      %113 = dma.done [#allocation9], 2048
    $region61: #{tpu_custom_call.1} parent=1 // pred_fallthru
      _
    %v115 = vld [vmem:[#allocation2] sm:$0xff]
    %v116 = vld [vmem:[#allocation2 + $0x8] sm:$0xff]
    %v117 = vpack.c.bf16 %v116, %v115
    %v118 = vld [vmem:[#allocation7] sm:$0xff]
    %v119 = vld [vmem:[#allocation7 + $0x8] sm:$0xff]
    %v120 = vld [vmem:[#allocation7 + $0x10] sm:$0xff]
    %v121 = vld [vmem:[#allocation7 + $0x18] sm:$0xff]
    %v122 = vld [vmem:[#allocation7 + $0x20] sm:$0xff]
    %v123 = vld [vmem:[#allocation7 + $0x28] sm:$0xff]
    %v124 = vld [vmem:[#allocation7 + $0x30] sm:$0xff]
    %v125 = vld [vmem:[#allocation7 + $0x38] sm:$0xff]
    %v126 = vld [vmem:[#allocation7 + $0x40] sm:$0xff]
    %v127 = vld [vmem:[#allocation7 + $0x48] sm:$0xff]
    %v128 = vld [vmem:[#allocation7 + $0x50] sm:$0xff]
    %v129 = vld [vmem:[#allocation7 + $0x58] sm:$0xff]
    %v130 = vld [vmem:[#allocation7 + $0x60] sm:$0xff]
    %v131 = vld [vmem:[#allocation7 + $0x68] sm:$0xff]
    %v132 = vld [vmem:[#allocation7 + $0x70] sm:$0xff]
    %v133 = vld [vmem:[#allocation7 + $0x78] sm:$0xff]
    %v134 = vpack.c.bf16 %v119, %v118
    %v135 = vpack.c.bf16 %v121, %v120
    %v136 = vpack.c.bf16 %v123, %v122
    %v137 = vpack.c.bf16 %v125, %v124
    %v138 = vpack.c.bf16 %v127, %v126
    %v139 = vpack.c.bf16 %v129, %v128
    %v140 = vpack.c.bf16 %v131, %v130
    %v141 = vpack.c.bf16 %v133, %v132
    %v142 = vld [vmem:[#allocation8] sm:$0xff]
    %v143 = vld [vmem:[#allocation8 + $0x8] sm:$0xff]
    %v144 = vld [vmem:[#allocation8 + $0x10] sm:$0xff]
    %v145 = vld [vmem:[#allocation8 + $0x18] sm:$0xff]
    %v146 = vld [vmem:[#allocation8 + $0x20] sm:$0xff]
    %v147 = vld [vmem:[#allocation8 + $0x28] sm:$0xff]
    %v148 = vld [vmem:[#allocation8 + $0x30] sm:$0xff]
    %v149 = vld [vmem:[#allocation8 + $0x38] sm:$0xff]
    %v150 = vld [vmem:[#allocation8 + $0x40] sm:$0xff]
    %v151 = vld [vmem:[#allocation8 + $0x48] sm:$0xff]
    %v152 = vld [vmem:[#allocation8 + $0x50] sm:$0xff]
    %v153 = vld [vmem:[#allocation8 + $0x58] sm:$0xff]
    %v154 = vld [vmem:[#allocation8 + $0x60] sm:$0xff]
    %v155 = vld [vmem:[#allocation8 + $0x68] sm:$0xff]
    %v156 = vld [vmem:[#allocation8 + $0x70] sm:$0xff]
    %v157 = vld [vmem:[#allocation8 + $0x78] sm:$0xff]
    %v158 = vpack.c.bf16 %v143, %v142
    %v159 = vpack.c.bf16 %v145, %v144
    %v160 = vpack.c.bf16 %v147, %v146
    %v161 = vpack.c.bf16 %v149, %v148
    %v162 = vpack.c.bf16 %v151, %v150
    %v163 = vpack.c.bf16 %v153, %v152
    %v164 = vpack.c.bf16 %v155, %v154
    %v165 = vpack.c.bf16 %v157, %v156
    %v166 = vld [vmem:[#allocation10] sm:$0xff]
    %v167 = vld [vmem:[#allocation10 + $0x8] sm:$0xff]
    %v168 = vld [vmem:[#allocation10 + $0x10] sm:$0xff]
    %v169 = vld [vmem:[#allocation10 + $0x18] sm:$0xff]
    %v170 = vld [vmem:[#allocation10 + $0x20] sm:$0xff]
    %v171 = vld [vmem:[#allocation10 + $0x28] sm:$0xff]
    %v172 = vld [vmem:[#allocation10 + $0x30] sm:$0xff]
    %v173 = vld [vmem:[#allocation10 + $0x38] sm:$0xff]
    %v174 = vld [vmem:[#allocation10 + $0x40] sm:$0xff]
    %v175 = vld [vmem:[#allocation10 + $0x48] sm:$0xff]
    %v176 = vld [vmem:[#allocation10 + $0x50] sm:$0xff]
    %v177 = vld [vmem:[#allocation10 + $0x58] sm:$0xff]
    %v178 = vld [vmem:[#allocation10 + $0x60] sm:$0xff]
    %v179 = vld [vmem:[#allocation10 + $0x68] sm:$0xff]
    %v180 = vld [vmem:[#allocation10 + $0x70] sm:$0xff]
    %v181 = vld [vmem:[#allocation10 + $0x78] sm:$0xff]
    %v182 = vpack.c.bf16 %v167, %v166
    %v183 = vpack.c.bf16 %v169, %v168
    %v184 = vpack.c.bf16 %v171, %v170
    %v185 = vpack.c.bf16 %v173, %v172
    %v186 = vpack.c.bf16 %v175, %v174
    %v187 = vpack.c.bf16 %v177, %v176
    %v188 = vpack.c.bf16 %v179, %v178
    %v189 = vpack.c.bf16 %v181, %v180
    %v190 = vld [vmem:[%s3] sm:$0x1]
    %v191 = vld [vmem:[%s5] sm:$0x1]
    %v192 = vld [vmem:[%s7] sm:$0x1]
    %v193 = vld [vmem:[%s8] sm:$0x1]
    %v194 = vld [vmem:[%s9] sm:$0x1]
    %v195 = vld [vmem:[#allocation5] sm:$0xff]
    %v196 = vld [vmem:[#allocation5 + $0x8] sm:$0xff]
    %v197 = vpack.c.bf16 %v196, %v195
    %v199 = vperm.slane %v190, 0
    %201 = vmatpush.bf16.msra.mxu0 %v141
    %202 = vmatpush.bf16.msra.mxu0 %v140
    %203 = vmatpush.bf16.msra.mxu0 %v139
    %204 = vmatpush.bf16.msra.mxu0 %v138
    %205 = vmatpush.bf16.msra.mxu0 %v137
    %206 = vmatpush.bf16.msra.mxu0 %v136
    %207 = vmatpush.bf16.msra.mxu0 %v135
    %208 = vmatpush.bf16.msra.mxu0 %v134
    %209 = vmatmul.bf16.gmra.mxu0 %v197
    %v210 = vpop.f32.mrf.mxu0
    %v211 = vadd.f32 %v199, %v210
    %v212 = vpop.f32.mrf.mxu0
    %v213 = vadd.f32 %v199, %v212
    %214 = vdwg.mxu0
    %v215 = vmax.f32 %v211, 0.0
    %v216 = vmax.f32 %v213, 0.0
    %v217 = vpack.c.bf16 %v216, %v215
    %vm218 = vcmask 130048
    %v220 = vsel %vm218, %v117, 0
    %222 = vmatpush.bf16.msra.mxu0 0
    %223 = vmatpush.bf16.msra.mxu0 0
    %224 = vmatpush.bf16.msra.mxu0 0
    %225 = vmatpush.bf16.msra.mxu0 0
    %226 = vmatpush.bf16.msra.mxu0 0
    %227 = vmatpush.bf16.msra.mxu0 0
    %228 = vmatpush.bf16.msra.mxu0 0
    %229 = vmatpush.bf16.msra.mxu0 %v217
    %230 = vmatmul.bf16.gmra.mxu0 %v220
    %v231 = vpop.f32.mrf.mxu0
    %v232 = vadd.f32 0.0, %v231
    %v233 = vpop.f32.mrf.mxu0
    %v234 = vadd.f32 0.0, %v233
    %235 = vdwg.mxu0
    %v236 = vpack.c.bf16 %v234, %v232
    %v238 = vperm.slane %v191, 0
    %240 = vmatpush.bf16.msra.mxu0 %v165
    %241 = vmatpush.bf16.msra.mxu0 %v164
    %242 = vmatpush.bf16.msra.mxu0 %v163
    %243 = vmatpush.bf16.msra.mxu0 %v162
    %244 = vmatpush.bf16.msra.mxu0 %v161
    %245 = vmatpush.bf16.msra.mxu0 %v160
    %246 = vmatpush.bf16.msra.mxu0 %v159
    %247 = vmatpush.bf16.msra.mxu0 %v158
    %248 = vmatmul.bf16.gmra.mxu0 %v236
    %v249 = vpop.f32.mrf.mxu0
    %v250 = vadd.f32 %v238, %v249
    %v251 = vpop.f32.mrf.mxu0
    %v252 = vadd.f32 %v238, %v251
    %253 = vdwg.mxu0
    %v254 = vmax.f32 %v250, 0.0
    %v255 = vmax.f32 %v252, 0.0
    %v256 = vpack.c.bf16 %v255, %v254
    %v258 = vperm.slane %v192, 0
    %260 = vmatpush.bf16.msra.mxu0 %v189
    %261 = vmatpush.bf16.msra.mxu0 %v188
    %262 = vmatpush.bf16.msra.mxu0 %v187
    %263 = vmatpush.bf16.msra.mxu0 %v186
    %264 = vmatpush.bf16.msra.mxu0 %v185
    %265 = vmatpush.bf16.msra.mxu0 %v184
    %266 = vmatpush.bf16.msra.mxu0 %v183
    %267 = vmatpush.bf16.msra.mxu0 %v182
    %268 = vmatmul.bf16.gmra.mxu0 %v256
    %v269 = vpop.f32.mrf.mxu0
    %v270 = vadd.f32 %v258, %v269
    %v271 = vpop.f32.mrf.mxu0
    %v272 = vadd.f32 %v258, %v271
    %273 = vdwg.mxu0
    %v274 = vadd.f32 %v270, %v272
    %v275 = vrot.slane %v274, 4
    %v276 = vadd.f32 %v274, %v275
    %v277 = vrot.slane %v276, 2
    %v278 = vadd.f32 %v276, %v277
    %v279 = vrot.slane %v278, 1
    %v280 = vadd.f32 %v278, %v279
    %v281 = vrcp.pop 16.0
    %v282 = vmul.f32 16.0, %v281
    %v283 = vsub.f32 1.0, %v282
    %v284 = vmul.f32 %v281, %v283
    %v285 = vadd.f32 %v281, %v284
    %vm286 = vweird.f32 %v281
    %v287 = vsel %vm286, %v281, %v285
    %v288 = vmul.f32 %v280, %v287
    %v289 = vsub.f32 %v270, %v288
    %v290 = vsub.f32 %v272, %v288
    %v291 = vmul.f32 %v289, %v289
    %v292 = vmul.f32 %v290, %v290
    %v293 = vadd.f32 %v291, %v292
    %v294 = vrot.slane %v293, 4
    %v295 = vadd.f32 %v293, %v294
    %v296 = vrot.slane %v295, 2
    %v297 = vadd.f32 %v295, %v296
    %v298 = vrot.slane %v297, 1
    %v299 = vadd.f32 %v297, %v298
    %v300 = vmul.f32 %v299, %v287
    %v301 = vadd.f32 %v300, 1e-05
    %v302 = vrsqrt.pop %v301
    %v303 = vmul.f32 %v302, %v301
    %v304 = vmul.f32 %v303, %v302
    %v305 = vmul.f32 0.5, %v304
    %v306 = vsub.f32 1.5, %v305
    %v307 = vmul.f32 %v302, %v306
    %vm308 = vweird.f32 %v301
    %vm309 = vweird.f32 %v302
    %vm310 = vmor %vm308, %vm309
    %v311 = vsel %vm310, %v302, %v307
    %v312 = vmul.f32 %v289, %v311
    %v313 = vmul.f32 %v290, %v311
    %v315 = vperm.slane %v193, 0
    %v317 = vmul.f32 %v312, %v315
    %v318 = vmul.f32 %v313, %v315
    %v320 = vperm.slane %v194, 0
    %v322 = vadd.f32 %v317, %v320
    %v323 = vadd.f32 %v318, %v320
    %v324 = vmax.f32 %v322, 0.0
    %v325 = vmax.f32 %v323, 0.0
    %v326 = vpack.c.bf16 %v325, %v324
    %327 = vmatpush.bf16.msra.mxu0 0
    %328 = vmatpush.bf16.msra.mxu0 0
    %329 = vmatpush.bf16.msra.mxu0 0
    %330 = vmatpush.bf16.msra.mxu0 0
    %331 = vmatpush.bf16.msra.mxu0 0
    %332 = vmatpush.bf16.msra.mxu0 0
    %333 = vmatpush.bf16.msra.mxu0 0
    %334 = vmatpush.bf16.msra.mxu0 %v326
    %335 = vmatmul.bf16.gmra.mxu0 %v220
    %v336 = vpop.f32.mrf.mxu0
    %v337 = vadd.f32 0.0, %v336
    %v338 = vpop.f32.mrf.mxu0
    %v339 = vadd.f32 0.0, %v338
    %340 = vdwg.mxu0
    %v341 = vpack.c.bf16 %v339, %v337
    %342 = vmatpush.bf16.msra.mxu0 %v165
    %343 = vmatpush.bf16.msra.mxu0 %v164
    %344 = vmatpush.bf16.msra.mxu0 %v163
    %345 = vmatpush.bf16.msra.mxu0 %v162
    %346 = vmatpush.bf16.msra.mxu0 %v161
    %347 = vmatpush.bf16.msra.mxu0 %v160
    %348 = vmatpush.bf16.msra.mxu0 %v159
    %349 = vmatpush.bf16.msra.mxu0 %v158
    %350 = vmatmul.bf16.gmra.mxu0 %v341
    %v351 = vpop.f32.mrf.mxu0
    %v352 = vadd.f32 %v238, %v351
    %v353 = vpop.f32.mrf.mxu0
    %v354 = vadd.f32 %v238, %v353
    %355 = vdwg.mxu0
    %v356 = vmax.f32 %v352, 0.0
    %v357 = vmax.f32 %v354, 0.0
    %v358 = vpack.c.bf16 %v357, %v356
    %359 = vmatpush.bf16.msra.mxu0 %v189
    %360 = vmatpush.bf16.msra.mxu0 %v188
    %361 = vmatpush.bf16.msra.mxu0 %v187
    %362 = vmatpush.bf16.msra.mxu0 %v186
    %363 = vmatpush.bf16.msra.mxu0 %v185
    %364 = vmatpush.bf16.msra.mxu0 %v184
    %365 = vmatpush.bf16.msra.mxu0 %v183
    %366 = vmatpush.bf16.msra.mxu0 %v182
    %367 = vmatmul.bf16.gmra.mxu0 %v358
    %v368 = vpop.f32.mrf.mxu0
    %v369 = vadd.f32 %v258, %v368
    %v370 = vpop.f32.mrf.mxu0
    %v371 = vadd.f32 %v258, %v370
    %372 = vdwg.mxu0
    %v373 = vadd.f32 %v369, %v371
    %v374 = vrot.slane %v373, 4
    %v375 = vadd.f32 %v373, %v374
    %v376 = vrot.slane %v375, 2
    %v377 = vadd.f32 %v375, %v376
    %v378 = vrot.slane %v377, 1
    %v379 = vadd.f32 %v377, %v378
    %v380 = vmul.f32 %v379, %v287
    %v381 = vsub.f32 %v369, %v380
    %v382 = vsub.f32 %v371, %v380
    %v383 = vmul.f32 %v381, %v381
    %v384 = vmul.f32 %v382, %v382
    %v385 = vadd.f32 %v383, %v384
    %v386 = vrot.slane %v385, 4
    %v387 = vadd.f32 %v385, %v386
    %v388 = vrot.slane %v387, 2
    %v389 = vadd.f32 %v387, %v388
    %v390 = vrot.slane %v389, 1
    %v391 = vadd.f32 %v389, %v390
    %v392 = vmul.f32 %v391, %v287
    %v393 = vadd.f32 %v392, 1e-05
    %v394 = vrsqrt.pop %v393
    %v395 = vmul.f32 %v394, %v393
    %v396 = vmul.f32 %v395, %v394
    %v397 = vmul.f32 0.5, %v396
    %v398 = vsub.f32 1.5, %v397
    %v399 = vmul.f32 %v394, %v398
    %vm400 = vweird.f32 %v393
    %vm401 = vweird.f32 %v394
    %vm402 = vmor %vm400, %vm401
    %v403 = vsel %vm402, %v394, %v399
    %v404 = vmul.f32 %v381, %v403
    %v405 = vmul.f32 %v382, %v403
    %v406 = vmul.f32 %v404, %v315
    %v407 = vmul.f32 %v405, %v315
    %v408 = vadd.f32 %v406, %v320
    %v409 = vadd.f32 %v407, %v320
    %v410 = vmax.f32 %v408, 0.0
    %v411 = vmax.f32 %v409, 0.0
    %v412 = vadd.f32 %v410, %v215
    %v413 = vadd.f32 %v411, %v216
    %414 = vst [vmem:[#allocation11] sm:$0xff] %v412
    %415 = vst [vmem:[#allocation11 + $0x8] sm:$0xff] %v413
    // Predicated region
    $region62: #{tpu_custom_call.1} parent=1 // pred_check
      _
    $region63: #{tpu_custom_call.1} parent=1 // pred_check_branch
      %417 = sbr.rel (0) target = $region65
    $region64: #{tpu_custom_call.1} parent=1 // pred_region
      %419 = vsyncadd [#allocation4], 0
      %s420 = sshll.u32 [#allocation11], 4
      %s421 = int_to_ptr.vmem [resolvable:$true] %s420
      %s422 = sshll.u32 %s10, 4
      %s423 = int_to_ptr.hbm [resolvable:$true] %s422
      %428 = dma.vmem_to_hbm [thread:$0]  %s421, 256, %s423, [#allocation4], 128, 128, 8
    $region65: #{tpu_custom_call.1} parent=1 // pred_fallthru
      _
    // Predicated region
    $region66: #{tpu_custom_call.1} parent=1 // pred_check
      _
    $region67: #{tpu_custom_call.1} parent=1 // pred_check_branch
      %430 = sbr.rel (0) target = $region69
    $region68: #{tpu_custom_call.1} parent=1 // pred_region
      %432 = dma.done [#allocation4], 256
    $region69: #{tpu_custom_call.1} parent=1 // pred_fallthru
      _
    %433 = vsyncpa [#allocation3], 1
    %434 = vsyncpa [#allocation6], 1
    %435 = vsyncpa [#allocation9], 1
    %436 = vsyncpa [#allocation4], 1

</llo_original>
